<compile_context>
chip_gen: v7x
topology: tpu7x:2x2x1
jax: 0.10.0
libtpu: 0.0.40
codegen_flags: <defaults>
</compile_context>

<pallas_src>
import jax
import jax.numpy as jnp
from jax.experimental import pallas as pl
from jax.experimental.pallas import tpu as pltpu


def _round_up(x, m):
    return ((x + m - 1) // m) * m


def _cdiv(a, b):
    return (a + b - 1) // b


def _block_spec(block_shape, index_map, buffers=None):
    """BlockSpec with an optional explicit buffer depth (graceful fallback)."""
    if buffers is not None and hasattr(pl, "Buffered"):
        try:
            return pl.BlockSpec(block_shape, index_map,
                                pipeline_mode=pl.Buffered(buffers))
        except TypeError:
            pass
    return pl.BlockSpec(block_shape, index_map)


def _vmem_capacity_bytes():
    """Physical VMEM per TensorCore (64 MiB on v7x, 128 MiB on v5e/v6e)."""
    try:
        cap = int(pltpu.get_tpu_info().vmem_capacity_bytes)
        if cap > 0:
            return cap
    except Exception:
        pass
    kind = ""
    try:
        kind = jax.devices()[0].device_kind.lower()
    except Exception:
        pass
    return 64 * 1024 * 1024 if "7" in kind else 128 * 1024 * 1024


def _make_kernel(lam, inv_lam):
    def kernel(x_ref, w_ref, b_ref, o_ref):
        # x_ref: (tb, H) native dtype ; w_ref: (L, H) torch Linear layout ;
        # b_ref: (L, 1) ; o_ref: (1, tb) f32.
        x = x_ref[...]
        w = w_ref[...]
        if w.dtype != x.dtype:
            # Cast the *small* weight to the activation dtype: never upcasts
            # the big (tb, H) tile; bf16 activations stay on the bf16 MXU path.
            w = w.astype(x.dtype)

        # logits^T[l, i] = sum_h W[l, h] * x[i, h]  ->  (L, tb), f32 accumulation.
        logits = jax.lax.dot_general(
            w, x,
            dimension_numbers=(((1,), (1,)), ((), ())),
            preferred_element_type=jnp.float32,
        ) + b_ref[...].astype(jnp.float32)

        # Stable softmax over labels (axis 0, sublanes).  max(e) == 1 exactly.
        m = jnp.max(logits, axis=0, keepdims=True)             # (1, tb)
        e = jnp.exp(logits - m)                                 # (L, tb)
        s = jnp.sum(e, axis=0, keepdims=True)                   # (1, tb), >= 1
        inv_s = 1.0 / s                                         # exact reciprocal

        # logsumexp(lam * p) with p = e / s:  lam*p = mz*e where mz = lam/s, and
        # max(lam*p) == mz (valid for lam > 0), so lam*p - max == mz*(e - 1).
        mz = lam * inv_s                                        # (1, tb)
        lse = mz + jnp.log(jnp.sum(jnp.exp(mz * (e - 1.0)), axis=0, keepdims=True))
        smooth_max = lse * inv_lam

        o_ref[...] = jnp.clip(1.0 - smooth_max, 1e-7, 1.0 - 1e-7)

    return kernel


def smooth_max_classifier_head(cls_token, weight, bias, lam, *, tb=None):
    """cls_token: (B, H); weight: (L, H) (torch Linear layout); bias: (L,);
    lam: positive scalar (frozen module hyper-parameter).  Returns (B,) f32."""
    B, H = cls_token.shape
    L = weight.shape[0]

    lam = float(lam)                      # frozen requires_grad=False parameter
    if not lam > 0.0:
        raise ValueError("smooth_max_classifier_head assumes lam > 0 "
                         f"(module default 10.0); got {lam}")
    inv_lam = 1.0 / lam

    itemsize_x = jnp.dtype(cls_token.dtype).itemsize
    itemsize_w = jnp.dtype(weight.dtype).itemsize
    H_pad = _round_up(H, 128)
    L_pad = _round_up(L, 8)
    # Sublane granularity of the activation dtype: 8 for f32, 16 for bf16, ...
    sublane = 8 * max(1, 4 // itemsize_x)

    # ---- batch tile: adaptive to H (x tile ~4 MiB), >= 2 tiles for v7x cores --
    if tb is None:
        row_bytes = H_pad * itemsize_x
        target_bytes = 4 << 20                                 # ~4 MiB per x tile
        tb = ((target_bytes // row_bytes) // 128) * 128
        tb = int(min(max(tb, 128), 2048))
        if B <= 128:
            tb = _round_up(max(B, 1), sublane)                 # single small tile
        else:
            # keep >= 2 grid steps so the 'parallel' axis spans both v7x cores
            tb = min(tb, _round_up(_cdiv(B, 2), 128))
            tb = max(tb, 128)
    else:
        tb = _round_up(max(int(tb), sublane), sublane)
        if B > tb:
            tb = _round_up(tb, 128)

    num_tiles = _cdiv(B, tb)
    Bp = num_tiles * tb
    tb_lanes = _round_up(tb, 128)

    b_col = bias.reshape(L, 1)                                 # bias as a column

    # ---- VMEM budget: per-generation cap, ~15% headroom, no double counting --
    x_buffers = 3 if (tb * H_pad * itemsize_x <= (1 << 20) and num_tiles >= 4) else 2
    x_bytes = x_buffers * tb * H_pad * itemsize_x              # streaming x tiles
    w_bytes = 1 * L_pad * H_pad * itemsize_w                   # Buffered(1): fetched once
    bias_bytes = 1 * L_pad * 128 * 4
    out_bytes = 2 * 8 * tb_lanes * 4
    tmp_bytes = 4 * L_pad * tb_lanes * 4                       # f32 logits/exp temporaries
    vmem_est = x_bytes + w_bytes + bias_bytes + out_bytes + tmp_bytes

    cap = _vmem_capacity_bytes()
    usable = min(int(cap * 0.85), cap - (8 << 20))             # Mosaic scratch headroom
    vmem_limit = int(min(max(vmem_est + (8 << 20), 32 << 20), usable))

    cost = pl.CostEstimate(
        flops=2 * B * H * L,
        transcendentals=2 * B * L + B,                         # two exp per label + log
        bytes_accessed=B * H * itemsize_x + L * H * itemsize_w + L * 4 + B * 4,
    )

    out = pl.pallas_call(
        _make_kernel(lam, inv_lam),
        out_shape=jax.ShapeDtypeStruct((1, Bp), jnp.float32),
        grid_spec=pltpu.PrefetchScalarGridSpec(
            num_scalar_prefetch=0,
            grid=(num_tiles,),
            in_specs=[
                # streaming batch tile of cls tokens
                _block_spec((tb, H), lambda i: (i, 0),
                            buffers=(3 if x_buffers == 3 else None)),
                # resident (L, H) weight / (L, 1) bias: constant index_map,
                # single buffer (fetched once).
                # TODO(synk): if num_labels reaches O(1000), tile L on a second
                # 'arbitrary' grid axis with an online logsumexp accumulator.
                _block_spec((L, H), lambda i: (0, 0), buffers=1),
                _block_spec((L, 1), lambda i: (0, 0), buffers=1),
            ],
            out_specs=pl.BlockSpec((1, tb), lambda i: (0, i)),  # lane-dense output
        ),
        compiler_params=pltpu.CompilerParams(
            dimension_semantics=("parallel",),
            vmem_limit_bytes=vmem_limit,
        ),
        cost_estimate=cost,
    )(cls_token, weight, b_col)

    return out[0, :B]


def _reference(cls_token, weight, bias, lam):
    logits = cls_token.astype(jnp.float32) @ weight.astype(jnp.float32).T + bias
    p = jax.nn.softmax(logits, axis=1)
    smooth_max = jax.nn.logsumexp(lam * p, axis=1) / lam
    return jnp.clip(1.0 - smooth_max, 1e-7, 1.0 - 1e-7)


if __name__ == "__main__":
    # Small shapes consistent with the module: batch=2, hidden=32, num_labels=4.
    B, H, L = 2, 32, 4
    lam = 10.0

    key = jax.random.PRNGKey(0)
    k_x, k_w, k_b = jax.random.split(key, 3)
    cls_token = jax.random.normal(k_x, (B, H), dtype=jnp.float32)
    # Deterministic synthetic Linear(H, L) parameters (torch layout: (L, H)).
    weight = jax.random.normal(k_w, (L, H), dtype=jnp.float32) * 0.05
    bias = jax.random.normal(k_b, (L,), dtype=jnp.float32) * 0.01

    out = smooth_max_classifier_head(cls_token, weight, bias, lam)
    out = jax.block_until_ready(out)
    ref = _reference(cls_token, weight, bias, lam)
    assert out.shape == (B,)
    assert jnp.allclose(out, ref, atol=1e-5, rtol=1e-5), (out, ref)

    # Exercise the mixed-dtype path (bf16 activations, f32 weights -> bf16 MXU,
    # f32 accumulation); tolerance reflects bf16 rounding of the operands.
    x_bf16 = cls_token.astype(jnp.bfloat16)
    out_bf16 = smooth_max_classifier_head(x_bf16, weight, bias, lam)
    out_bf16 = jax.block_until_ready(out_bf16)
    ref_bf16 = _reference(x_bf16.astype(jnp.float32), weight, bias, lam)
    assert jnp.allclose(out_bf16, ref_bf16, atol=1e-2, rtol=1e-2), (out_bf16, ref_bf16)

    print("KERNEL_OK")
</pallas_src>

<mosaic_0001>
module attributes {stable_mosaic.version = 11 : i64} {
  func.func @kernel(%arg0: i32, %arg1: memref<8x32xf32, #tpu.memory_space<vmem>>, %arg2: memref<4x32xf32, #tpu.memory_space<vmem>>, %arg3: memref<4x1xf32, #tpu.memory_space<vmem>>, %arg4: memref<1x8xf32, #tpu.memory_space<vmem>>) attributes {dimension_semantics = [#tpu.dimension_semantics<parallel>], iteration_bounds = array<i64: 1>, scalar_prefetch = 0 : i64, scratch_operands = 0 : i64, tpu.core_type = #tpu.core_type<tc>, window_params = [{transform_indices = @transform_0, window_bounds = array<i64: 8, 32>}, {pipeline_mode = #tpu.pipeline_mode<synchronous>, transform_indices = @transform_1, window_bounds = array<i64: 4, 32>}, {pipeline_mode = #tpu.pipeline_mode<synchronous>, transform_indices = @transform_2, window_bounds = array<i64: 4, 1>}, {transform_indices = @transform_3, window_bounds = array<i64: 1, 8>}]} {
    %c0 = arith.constant 0 : index
    %c0_0 = arith.constant 0 : index
    %0 = vector.load %arg1[%c0, %c0_0] : memref<8x32xf32, #tpu.memory_space<vmem>>, vector<8x32xf32>
    %c0_1 = arith.constant 0 : index
    %c0_2 = arith.constant 0 : index
    %1 = vector.load %arg2[%c0_1, %c0_2] : memref<4x32xf32, #tpu.memory_space<vmem>>, vector<4x32xf32>
    %cst = arith.constant dense<0.000000e+00> : vector<4x8xf32>
    %2 = tpu.matmul %1, %0, %cst {dimension_numbers = #tpu.dot_dimension_numbers<[1], [1], [0], [0], [0, 0, 1, 0], [], []>} : vector<4x32xf32>, vector<8x32xf32>, vector<4x8xf32> -> vector<4x8xf32>
    %c0_3 = arith.constant 0 : index
    %c0_4 = arith.constant 0 : index
    %3 = vector.load %arg3[%c0_3, %c0_4] : memref<4x1xf32, #tpu.memory_space<vmem>>, vector<4x1xf32>
    %4 = vector.broadcast %3 : vector<4x1xf32> to vector<4x8xf32>
    %5 = arith.addf %2, %4 : vector<4x8xf32>
    %cst_5 = arith.constant dense<0xFF800000> : vector<8xf32>
    %6 = vector.multi_reduction <maximumf>, %5, %cst_5 [0] : vector<4x8xf32> to vector<8xf32>
    %7 = vector.shape_cast %6 : vector<8xf32> to vector<1x8xf32>
    %8 = vector.broadcast %7 : vector<1x8xf32> to vector<4x8xf32>
    %9 = arith.subf %5, %8 : vector<4x8xf32>
    %10 = math.exp %9 : vector<4x8xf32>
    %cst_6 = arith.constant dense<0.000000e+00> : vector<8xf32>
    %11 = vector.multi_reduction <add>, %10, %cst_6 [0] : vector<4x8xf32> to vector<8xf32>
    %12 = vector.shape_cast %11 : vector<8xf32> to vector<1x8xf32>
    %cst_7 = arith.constant 1.000000e+00 : f32
    %13 = vector.broadcast %cst_7 : f32 to vector<1x8xf32>
    %14 = arith.divf %13, %12 : vector<1x8xf32>
    %cst_8 = arith.constant 1.000000e+01 : f32
    %15 = vector.broadcast %cst_8 : f32 to vector<1x8xf32>
    %16 = arith.mulf %15, %14 : vector<1x8xf32>
    %cst_9 = arith.constant 1.000000e+00 : f32
    %17 = vector.broadcast %cst_9 : f32 to vector<4x8xf32>
    %18 = arith.subf %10, %17 : vector<4x8xf32>
    %19 = vector.broadcast %16 : vector<1x8xf32> to vector<4x8xf32>
    %20 = arith.mulf %19, %18 : vector<4x8xf32>
    %21 = math.exp %20 : vector<4x8xf32>
    %cst_10 = arith.constant dense<0.000000e+00> : vector<8xf32>
    %22 = vector.multi_reduction <add>, %21, %cst_10 [0] : vector<4x8xf32> to vector<8xf32>
    %23 = vector.shape_cast %22 : vector<8xf32> to vector<1x8xf32>
    %24 = math.log %23 : vector<1x8xf32>
    %25 = arith.addf %16, %24 : vector<1x8xf32>
    %cst_11 = arith.constant 1.000000e-01 : f32
    %26 = vector.broadcast %cst_11 : f32 to vector<1x8xf32>
    %27 = arith.mulf %25, %26 : vector<1x8xf32>
    %cst_12 = arith.constant 1.000000e+00 : f32
    %28 = vector.broadcast %cst_12 : f32 to vector<1x8xf32>
    %29 = arith.subf %28, %27 : vector<1x8xf32>
    %cst_13 = arith.constant 1.000000e-07 : f32
    %cst_14 = arith.constant 0.99999988 : f32
    %30 = vector.broadcast %cst_13 : f32 to vector<1x8xf32>
    %31 = arith.maximumf %30, %29 : vector<1x8xf32>
    %32 = vector.broadcast %cst_14 : f32 to vector<1x8xf32>
    %33 = arith.minimumf %32, %31 : vector<1x8xf32>
    %c0_15 = arith.constant 0 : index
    %c0_16 = arith.constant 0 : index
    %34 = vector.load %arg4[%c0_15, %c0_16] : memref<1x8xf32, #tpu.memory_space<vmem>>, vector<1x8xf32>
    tpu.vector_store %arg4[%c0_15, %c0_16], %33 {strides = array<i32>} : memref<1x8xf32, #tpu.memory_space<vmem>>, vector<1x8xf32>,
    return
  }
  func.func @transform_0(%arg0: i32) -> (i32, i32) {
    %c0_i32 = arith.constant 0 : i32
    %c0_i32_0 = arith.constant 0 : i32
    return %arg0, %c0_i32 : i32, i32
  }
  func.func @transform_1(%arg0: i32) -> (i32, i32) {
    %c0_i32 = arith.constant 0 : i32
    %c0_i32_0 = arith.constant 0 : i32
    %c0_i32_1 = arith.constant 0 : i32
    return %c0_i32, %c0_i32_0 : i32, i32
  }
  func.func @transform_2(%arg0: i32) -> (i32, i32) {
    %c0_i32 = arith.constant 0 : i32
    %c0_i32_0 = arith.constant 0 : i32
    %c0_i32_1 = arith.constant 0 : i32
    return %c0_i32, %c0_i32_0 : i32, i32
  }
  func.func @transform_3(%arg0: i32) -> (i32, i32) {
    %c0_i32 = arith.constant 0 : i32
    %c0_i32_0 = arith.constant 0 : i32
    return %c0_i32, %arg0 : i32, i32
  }
}

</mosaic_0001>

<llo_original>
// kernel: tpu_custom_call.1
$region0: #{tpu_custom_call.1}
  #allocation0 [shape = 'u32[]', space=smem, size = 0x4, offset = 0x4, fixed_abs, tag = 'smem constant byte address 0x4 - core index']
  #allocation1 [shape = 'u32[144,128]{1,0:T(1,128)}', space=vmem, size = 0x12000, scoped, tag = 'internal scratch']
  %s0 = inlined_call_operand.vmem [shape: f32[2,32], index: 0, kind: input, shape index: {}]
  %s1 = inlined_call_operand.vmem [shape: f32[4,32], index: 1, kind: input, shape index: {}]
  %s2 = inlined_call_operand.vmem [shape: f32[4,1], index: 2, kind: input, shape index: {}]
  %s3 = inlined_call_operand.hbm [shape: f32[1,8], index: 3, kind: output, shape index: {}]
  %s4 = sld [smem:[#allocation0]]
  $region22: #{tpu_custom_call.1} parent=0
    _
  %s6 = ssub.s32 1, %s4
  %s7 = scalar_select 0, %s6, %s4
  $region1: #{tpu_custom_call.1} parent=0
    #allocation2 [shape = 'u8[512]{0}', space=vmem, size = 0x400, scoped, tag = 'output window, operand 0, single buffered']
    #allocation3 [shape = 's32[1]{0}', space=sflag, size = 0x4, scoped, tag = 'scoped memory for tpu_custom_call.1']
    %8 = vsyncpa [#allocation3], 0
    // Predicated region
    $region2: #{tpu_custom_call.1} parent=1 // pred_check
      _
    $region3: #{tpu_custom_call.1} parent=1 // pred_check_branch
      %10 = sbr.rel (0) target = $region5
    $region4: #{tpu_custom_call.1} parent=1 // pred_region
      _
    $region5: #{tpu_custom_call.1} parent=1 // pred_fallthru
      _
    // Predicated region
    $region6: #{tpu_custom_call.1} parent=1 // pred_check
      _
    $region7: #{tpu_custom_call.1} parent=1 // pred_check_branch
      %12 = sbr.rel (0) target = $region9
    $region8: #{tpu_custom_call.1} parent=1 // pred_region
      _
    $region9: #{tpu_custom_call.1} parent=1 // pred_fallthru
      _
    // Predicated region
    $region10: #{tpu_custom_call.1} parent=1 // pred_check
      _
    $region11: #{tpu_custom_call.1} parent=1 // pred_check_branch
      %14 = sbr.rel (0) target = $region13
    $region12: #{tpu_custom_call.1} parent=1 // pred_region
      _
    $region13: #{tpu_custom_call.1} parent=1 // pred_fallthru
      _
    %v15 = vld [vmem:[%s0] sm:$0xff]
    %v16 = vld [vmem:[%s1] sm:$0xf]
    %v17 = vld [vmem:[%s2] sm:$0xf]
    %19 = vset.pattern.permute.xlu0 0
    %20 = vperm.xlu0 %19, %v17
    %v21 = vpop.permute.xlu0 %20
    %vm23 = vcmask 261120
    %v25 = vsel %vm23, %v16, 0
    %v28 = vsel %vm23, %v15, 0
    %30 = vmatprep.subr.mxu0 0.0
    %31 = vmatpush1.xpose.msra.mxu0 %v28
    %32 = vmatprep.subr.mxu0 0.0
    %33 = vmatpush1.xpose.msra.mxu0 0.0
    %34 = vmatprep.subr.mxu0 0.0
    %35 = vmatpush1.xpose.msra.mxu0 0.0
    %36 = vmatprep.subr.mxu0 0.0
    %37 = vmatpush1.xpose.msra.mxu0 0.0
    %38 = vmatprep.subr.mxu0 0.0
    %39 = vmatpush1.xpose.msra.mxu0 0.0
    %40 = vmatprep.subr.mxu0 0.0
    %41 = vmatpush1.xpose.msra.mxu0 0.0
    %42 = vmatprep.subr.mxu0 0.0
    %43 = vmatpush1.xpose.msra.mxu0 0.0
    %44 = vmatprep.subr.mxu0 0.0
    %45 = vmatpush1.xpose.msra.mxu0 0.0
    %46 = vmatprep.subr.mxu0 0.0
    %47 = vmatpush1.xpose.msra.mxu0 0.0
    %48 = vmatprep.subr.mxu0 0.0
    %49 = vmatpush1.xpose.msra.mxu0 0.0
    %50 = vmatprep.subr.mxu0 0.0
    %51 = vmatpush1.xpose.msra.mxu0 0.0
    %52 = vmatprep.subr.mxu0 0.0
    %53 = vmatpush1.xpose.msra.mxu0 0.0
    %54 = vmatprep.subr.mxu0 0.0
    %55 = vmatpush1.xpose.msra.mxu0 0.0
    %56 = vmatprep.subr.mxu0 0.0
    %57 = vmatpush1.xpose.msra.mxu0 0.0
    %58 = vmatprep.subr.mxu0 0.0
    %59 = vmatpush1.xpose.msra.mxu0 0.0
    %60 = vmatprep.subr.mxu0 0.0
    %61 = vmatpush1.xpose.msra.mxu0 0.0
    %62 = vmatprep.subr.mxu0 0.0
    %63 = vmatpush1.xpose.msra.mxu0 0.0
    %64 = vmatprep.subr.mxu0 0.0
    %65 = vmatpush1.xpose.msra.mxu0 0.0
    %66 = vmatprep.subr.mxu0 0.0
    %67 = vmatpush1.xpose.msra.mxu0 0.0
    %68 = vmatprep.subr.mxu0 0.0
    %69 = vmatpush1.xpose.msra.mxu0 0.0
    %70 = vmatprep.subr.mxu0 0.0
    %71 = vmatpush1.xpose.msra.mxu0 0.0
    %72 = vmatprep.subr.mxu0 0.0
    %73 = vmatpush1.xpose.msra.mxu0 0.0
    %74 = vmatprep.subr.mxu0 0.0
    %75 = vmatpush1.xpose.msra.mxu0 0.0
    %76 = vmatprep.subr.mxu0 0.0
    %77 = vmatpush1.xpose.msra.mxu0 0.0
    %78 = vmatprep.subr.mxu0 0.0
    %79 = vmatpush1.xpose.msra.mxu0 0.0
    %80 = vmatprep.subr.mxu0 0.0
    %81 = vmatpush1.xpose.msra.mxu0 0.0
    %82 = vmatprep.subr.mxu0 0.0
    %83 = vmatpush1.xpose.msra.mxu0 0.0
    %84 = vmatprep.subr.mxu0 0.0
    %85 = vmatpush1.xpose.msra.mxu0 0.0
    %86 = vmatprep.subr.mxu0 0.0
    %87 = vmatpush1.xpose.msra.mxu0 0.0
    %88 = vmatprep.subr.mxu0 0.0
    %89 = vmatpush1.xpose.msra.mxu0 0.0
    %90 = vmatprep.subr.mxu0 0.0
    %91 = vmatpush1.xpose.msra.mxu0 0.0
    %92 = vmatprep.subr.mxu0 0.0
    %93 = vmatpush1.xpose.msra.mxu0 0.0
    %94 = vmatprep.mubr.f32.mxu0 0.0
    %95 = vmatmul.mubr.f32.gmra.mrb[0].mxu0 %v25
    %v96 = vpop.f32.mrb[0].mxu0
    %v97 = vadd.f32 %v21, %v96
    %v98 = vpop.f32.mrb[0].mxu0
    %99 = vdwg.mxu0
    %vm100 = vcmask 60416
    %v101 = vsel %vm100, %v97, -inf
    %v102 = vrot.slane %v101, 4
    %v103 = vmax.f32 %v101, %v102
    %v104 = vrot.slane %v103, 2
    %v105 = vmax.f32 %v103, %v104
    %v106 = vrot.slane %v105, 1
    %v107 = vmax.f32 %v105, %v106
    %v108 = vsub.f32 %v97, %v107
    %v109 = vmul.f32 %v108, 1.442695
    %v110 = vpow.pop %v109
    %v111 = vsel %vm100, %v110, 0.0
    %v112 = vrot.slane %v111, 4
    %v113 = vadd.f32 %v111, %v112
    %v114 = vrot.slane %v113, 2
    %v115 = vadd.f32 %v113, %v114
    %v116 = vrot.slane %v115, 1
    %v117 = vadd.f32 %v115, %v116
    %v118 = vrcp.pop %v117
    %v119 = vmul.f32 1.0, %v118
    %v120 = vmul.f32 %v119, 10.0
    %v121 = vsub.f32 %v110, 1.0
    %v122 = vmul.f32 %v120, %v121
    %v123 = vmul.f32 %v122, 1.442695
    %v124 = vpow.pop %v123
    %v125 = vsel %vm100, %v124, 0.0
    %v126 = vrot.slane %v125, 4
    %v127 = vadd.f32 %v125, %v126
    %v128 = vrot.slane %v127, 2
    %v129 = vadd.f32 %v127, %v128
    %v130 = vrot.slane %v129, 1
    %v131 = vadd.f32 %v129, %v130
    %v132 = vlog2.pop %v131
    %v133 = vmul.f32 %v132, 0.6931472
    %v134 = vadd.f32 %v120, %v133
    %v135 = vmul.f32 %v134, 0.1
    %v136 = vsub.f32 1.0, %v135
    %v137 = vmax.f32 %v136, 1e-07
    %v138 = vmin.f32 %v137, 0.9999999
    %vm139 = vcmask 57344
    %140 = vst.msk [vmem:[#allocation2] sm:$0x1] %vm139, %v138
    // Predicated region
    $region14: #{tpu_custom_call.1} parent=1 // pred_check
      _
    $region15: #{tpu_custom_call.1} parent=1 // pred_check_branch
      %142 = sbr.rel (0) target = $region17
    $region16: #{tpu_custom_call.1} parent=1 // pred_region
      %s144 = ssub.s32 16, 16
      %145 = vsyncadd [#allocation3], %s144
      %s147 = sshll.u32 [#allocation2], 4
      %s148 = int_to_ptr.vmem [resolvable:$true] %s147
      %150 = dma.vmem_to_hbm [thread:$0]  %s148, 16, %s3, [#allocation3]
    $region17: #{tpu_custom_call.1} parent=1 // pred_fallthru
      _
    // Predicated region
    $region18: #{tpu_custom_call.1} parent=1 // pred_check
      _
    $region19: #{tpu_custom_call.1} parent=1 // pred_check_branch
      %152 = sbr.rel (0) target = $region21
    $region20: #{tpu_custom_call.1} parent=1 // pred_region
      %153 = dma.done [#allocation3], 16
    $region21: #{tpu_custom_call.1} parent=1 // pred_fallthru
      _
    %154 = vsyncpa [#allocation3], 1

</llo_original>
